<compile_context>
chip_gen: v7x
topology: tpu7x:2x2x1
jax: 0.10.0
libtpu: 0.0.40
codegen_flags: <defaults>
</compile_context>

<pallas_src>
import functools

import jax
import jax.numpy as jnp
from jax.experimental import pallas as pl
from jax.experimental.pallas import tpu as pltpu

SQRT_HALF = 0.7071067811865476  # sqrt(1/2)


def _noma_kernel(x_n_ref, x_f_ref, sig_n_ref, sig_f_ref,
                 noise_n_ref, noise_f_ref,
                 w_n_ref, b_n_ref, w_f_ref, b_f_ref,
                 s_n_ref, s_f_ref, *, C, HW):
    # Block shapes: x / noise / s are (Bb, C*HW); sig_* are (Bb, 1); w/b in SMEM.
    x_n = x_n_ref[...]
    x_f = x_f_ref[...]

    # ---- power_norm (type='real', keep_shape=True) fused with sqrt(1/2):
    # sc = sqrt(1/2)*x_n*rsqrt(mean(x_n^2)) + sqrt(1/2)*x_f*rsqrt(mean(x_f^2))
    # (no eps, matching the original power_norm / the reference)
    scale_n = SQRT_HALF * jax.lax.rsqrt(
        jnp.mean(x_n * x_n, axis=-1, keepdims=True))            # (Bb, 1)
    scale_f = SQRT_HALF * jax.lax.rsqrt(
        jnp.mean(x_f * x_f, axis=-1, keepdims=True))
    sc = x_n * scale_n + x_f * scale_f

    # ---- direct decoder: 1x1 conv over C channels + bias + sigmoid.
    # Channel c is the static, vreg-aligned lane slice [:, c*HW:(c+1)*HW];
    # each output channel is written directly to its aligned output slice.
    def decode(y, w_ref, b_ref, out_ref):
        y_ch = [y[:, c * HW:(c + 1) * HW] for c in range(C)]    # (Bb, HW) views
        for o in range(C):
            acc = y_ch[0] * w_ref[0, o]
            for c in range(1, C):
                acc = acc + y_ch[c] * w_ref[c, o]
            out_ref[:, o * HW:(o + 1) * HW] = jax.nn.sigmoid(acc + b_ref[o])

    # ---- AWGN channel + decoder: near user first, then far user (keeps only
    # sc + one y live at a time -> smaller peak VMEM/vreg footprint).
    decode(sc + sig_n_ref[...] * noise_n_ref[...], w_n_ref, b_n_ref, s_n_ref)
    decode(sc + sig_f_ref[...] * noise_f_ref[...], w_f_ref, b_f_ref, s_f_ref)


def _round_up(n, m):
    return ((n + m - 1) // m) * m


def _pick_batch_block(B, D, target_bytes=1 << 20, cap=256):
    # ~1 MiB per streamed tensor block, multiple of 8; don't over-pad tiny B.
    bb = (target_bytes // (D * 4)) // 8 * 8
    bb = max(8, min(cap, bb))
    return min(bb, _round_up(B, 8))


def noma_forward_pallas(x_n_nchw, x_f_nchw, csi_n, csi_f,
                        noise_n, noise_f, w_n, b_n, w_f, b_f):
    B, C, H, W = x_n_nchw.shape
    HW = H * W
    D = C * HW

    # NCHW -> (B, C*HW) is a free reshape (no HBM transposes); lane-dense layout.
    x_n = x_n_nchw.reshape(B, D)
    x_f = x_f_nchw.reshape(B, D)
    nse_n = noise_n.reshape(B, D)
    nse_f = noise_f.reshape(B, D)

    # Per-sample AWGN std sigma = 10^(-csi/20), computed once outside the kernel.
    sig_n = jnp.power(10.0, -csi_n / 20.0).reshape(B, 1).astype(jnp.float32)
    sig_f = jnp.power(10.0, -csi_f / 20.0).reshape(B, 1).astype(jnp.float32)

    Bb = _pick_batch_block(B, D)
    Bp = _round_up(B, Bb)                      # pad B up instead of shrinking Bb
    if Bp != B:
        pad = Bp - B
        # Pad x with ones so mean(x^2)=1 on padded rows (rsqrt stays finite);
        # padded outputs are sliced away below.
        x_n = jnp.pad(x_n, ((0, pad), (0, 0)), constant_values=1.0)
        x_f = jnp.pad(x_f, ((0, pad), (0, 0)), constant_values=1.0)
        nse_n = jnp.pad(nse_n, ((0, pad), (0, 0)))
        nse_f = jnp.pad(nse_f, ((0, pad), (0, 0)))
        sig_n = jnp.pad(sig_n, ((0, pad), (0, 0)), constant_values=1.0)
        sig_f = jnp.pad(sig_f, ((0, pad), (0, 0)), constant_values=1.0)

    blk = pl.BlockSpec((Bb, D), lambda i: (i, 0))
    sblk = pl.BlockSpec((Bb, 1), lambda i: (i, 0))
    smem = pl.BlockSpec(memory_space=pltpu.MemorySpace.SMEM)   # tiny weights/biases

    kernel = functools.partial(_noma_kernel, C=C, HW=HW)

    s_n, s_f = pl.pallas_call(
        kernel,
        grid=(Bp // Bb,),
        in_specs=[blk, blk, sblk, sblk, blk, blk, smem, smem, smem, smem],
        out_specs=(blk, blk),
        out_shape=(
            jax.ShapeDtypeStruct((Bp, D), jnp.float32),
            jax.ShapeDtypeStruct((Bp, D), jnp.float32),
        ),
        compiler_params=pltpu.CompilerParams(
            dimension_semantics=("parallel",)),    # batch blocks are independent
    )(x_n, x_f, sig_n, sig_f, nse_n, nse_f, w_n, b_n, w_f, b_f)

    # channel_use ('real' channel): C*H*W real channel uses per sample (constant,
    # computed in the wrapper instead of per-step SMEM stores in the kernel).
    cu = jnp.full((B,), float(D), jnp.float32)
    return (s_n[:B].reshape(B, C, H, W), s_f[:B].reshape(B, C, H, W), cu, cu)


def noma_forward_ref(x_n_nchw, x_f_nchw, csi_n, csi_f,
                     noise_n, noise_f, w_n, b_n, w_f, b_f):
    """Pure-JAX reference with identical semantics."""
    B, C, H, W = x_n_nchw.shape
    HW = H * W
    xn = x_n_nchw.reshape(B, C, HW)
    xf = x_f_nchw.reshape(B, C, HW)
    pn = jnp.mean(xn ** 2, axis=(1, 2), keepdims=True)
    pf = jnp.mean(xf ** 2, axis=(1, 2), keepdims=True)
    sc = SQRT_HALF * xn / jnp.sqrt(pn) + SQRT_HALF * xf / jnp.sqrt(pf)
    sig_n = jnp.power(10.0, -csi_n / 20.0)[:, None, None]
    sig_f = jnp.power(10.0, -csi_f / 20.0)[:, None, None]
    y_n = sc + sig_n * noise_n
    y_f = sc + sig_f * noise_f
    s_n = jax.nn.sigmoid(jnp.einsum('bch,co->boh', y_n, w_n) + b_n[None, :, None])
    s_f = jax.nn.sigmoid(jnp.einsum('bch,co->boh', y_f, w_f) + b_f[None, :, None])
    cu = jnp.full((B,), float(HW * C), jnp.float32)
    return s_n.reshape(B, C, H, W), s_f.reshape(B, C, H, W), cu, cu


if __name__ == "__main__":
    key = jax.random.PRNGKey(0)
    ks = jax.random.split(key, 8)

    B, C, H, W = 2, 4, 16, 16
    HW = H * W

    # Inputs in PyTorch NCHW convention
    x_n = jax.random.normal(ks[0], (B, C, H, W), jnp.float32)
    x_f = jax.random.normal(ks[1], (B, C, H, W), jnp.float32)
    csi_n = jnp.array([10.0, 5.0], jnp.float32)   # per-sample SNR (dB), near user
    csi_f = jnp.array([0.0, 3.0], jnp.float32)    # per-sample SNR (dB), far user

    # Deterministic channel noise (generated in-script, (B, C, HW) layout)
    noise_n = jax.random.normal(ks[2], (B, C, HW), jnp.float32)
    noise_f = jax.random.normal(ks[3], (B, C, HW), jnp.float32)

    # Deterministic decoder parameters (1x1 conv: w[c_in, c_out] + bias[c_out])
    w_n = 0.5 * jax.random.normal(ks[4], (C, C), jnp.float32)
    b_n = 0.1 * jax.random.normal(ks[5], (C,), jnp.float32)
    w_f = 0.5 * jax.random.normal(ks[6], (C, C), jnp.float32)
    b_f = 0.1 * jax.random.normal(ks[7], (C,), jnp.float32)

    outs = noma_forward_pallas(x_n, x_f, csi_n, csi_f, noise_n, noise_f,
                               w_n, b_n, w_f, b_f)
    outs = jax.block_until_ready(outs)

    refs = noma_forward_ref(x_n, x_f, csi_n, csi_f, noise_n, noise_f,
                            w_n, b_n, w_f, b_f)
    names = ("s_n_hat", "s_f_hat", "channel_use_n", "channel_use_f")
    for name, o, r in zip(names, outs, refs):
        assert o.shape == r.shape, f"{name}: shape {o.shape} vs {r.shape}"
        assert jnp.allclose(o, r, atol=1e-3, rtol=1e-3), f"{name}: mismatch vs reference"

    print("KERNEL_OK")
</pallas_src>

<mosaic_0001>
module attributes {stable_mosaic.version = 11 : i64} {
  func.func @_noma_kernel(%arg0: i32, %arg1: memref<8x1024xf32, #tpu.memory_space<vmem>>, %arg2: memref<8x1024xf32, #tpu.memory_space<vmem>>, %arg3: memref<8x1xf32, #tpu.memory_space<vmem>>, %arg4: memref<8x1xf32, #tpu.memory_space<vmem>>, %arg5: memref<8x1024xf32, #tpu.memory_space<vmem>>, %arg6: memref<8x1024xf32, #tpu.memory_space<vmem>>, %arg7: memref<4x4xf32, #tpu.memory_space<smem>>, %arg8: memref<4xf32, #tpu.memory_space<smem>>, %arg9: memref<4x4xf32, #tpu.memory_space<smem>>, %arg10: memref<4xf32, #tpu.memory_space<smem>>, %arg11: memref<8x1024xf32, #tpu.memory_space<vmem>>, %arg12: memref<8x1024xf32, #tpu.memory_space<vmem>>) attributes {dimension_semantics = [#tpu.dimension_semantics<parallel>], iteration_bounds = array<i64: 1>, scalar_prefetch = 0 : i64, scratch_operands = 0 : i64, tpu.core_type = #tpu.core_type<tc>, window_params = [{transform_indices = @transform_0, window_bounds = array<i64: 8, 1024>}, {transform_indices = @transform_1, window_bounds = array<i64: 8, 1024>}, {transform_indices = @transform_2, window_bounds = array<i64: 8, 1>}, {transform_indices = @transform_3, window_bounds = array<i64: 8, 1>}, {transform_indices = @transform_4, window_bounds = array<i64: 8, 1024>}, {transform_indices = @transform_5, window_bounds = array<i64: 8, 1024>}, {transform_indices = @transform_6, window_bounds = array<i64: 4, 4>}, {transform_indices = @transform_7, window_bounds = array<i64: 4>}, {transform_indices = @transform_8, window_bounds = array<i64: 4, 4>}, {transform_indices = @transform_9, window_bounds = array<i64: 4>}, {transform_indices = @transform_10, window_bounds = array<i64: 8, 1024>}, {transform_indices = @transform_11, window_bounds = array<i64: 8, 1024>}]} {
    %c0 = arith.constant 0 : index
    %c0_0 = arith.constant 0 : index
    %0 = vector.load %arg1[%c0, %c0_0] : memref<8x1024xf32, #tpu.memory_space<vmem>>, vector<8x1024xf32>
    %c0_1 = arith.constant 0 : index
    %c0_2 = arith.constant 0 : index
    %1 = vector.load %arg2[%c0_1, %c0_2] : memref<8x1024xf32, #tpu.memory_space<vmem>>, vector<8x1024xf32>
    %2 = arith.mulf %0, %0 : vector<8x1024xf32>
    %cst = arith.constant dense<0.000000e+00> : vector<8xf32>
    %3 = vector.multi_reduction <add>, %2, %cst [1] : vector<8x1024xf32> to vector<8xf32>
    %4 = vector.shape_cast %3 : vector<8xf32> to vector<8x1xf32>
    %cst_3 = arith.constant 1.024000e+03 : f32
    %5 = vector.broadcast %cst_3 : f32 to vector<8x1xf32>
    %6 = arith.divf %4, %5 : vector<8x1xf32>
    %7 = math.rsqrt %6 : vector<8x1xf32>
    %cst_4 = arith.constant 0.707106769 : f32
    %8 = vector.broadcast %cst_4 : f32 to vector<8x1xf32>
    %9 = arith.mulf %8, %7 : vector<8x1xf32>
    %10 = arith.mulf %1, %1 : vector<8x1024xf32>
    %cst_5 = arith.constant dense<0.000000e+00> : vector<8xf32>
    %11 = vector.multi_reduction <add>, %10, %cst_5 [1] : vector<8x1024xf32> to vector<8xf32>
    %12 = vector.shape_cast %11 : vector<8xf32> to vector<8x1xf32>
    %cst_6 = arith.constant 1.024000e+03 : f32
    %13 = vector.broadcast %cst_6 : f32 to vector<8x1xf32>
    %14 = arith.divf %12, %13 : vector<8x1xf32>
    %15 = math.rsqrt %14 : vector<8x1xf32>
    %cst_7 = arith.constant 0.707106769 : f32
    %16 = vector.broadcast %cst_7 : f32 to vector<8x1xf32>
    %17 = arith.mulf %16, %15 : vector<8x1xf32>
    %18 = vector.broadcast %9 : vector<8x1xf32> to vector<8x1024xf32>
    %19 = arith.mulf %0, %18 : vector<8x1024xf32>
    %20 = vector.broadcast %17 : vector<8x1xf32> to vector<8x1024xf32>
    %21 = arith.mulf %1, %20 : vector<8x1024xf32>
    %22 = arith.addf %19, %21 : vector<8x1024xf32>
    %c0_8 = arith.constant 0 : index
    %c0_9 = arith.constant 0 : index
    %23 = vector.load %arg3[%c0_8, %c0_9] : memref<8x1xf32, #tpu.memory_space<vmem>>, vector<8x1xf32>
    %c0_10 = arith.constant 0 : index
    %c0_11 = arith.constant 0 : index
    %24 = vector.load %arg5[%c0_10, %c0_11] : memref<8x1024xf32, #tpu.memory_space<vmem>>, vector<8x1024xf32>
    %25 = vector.broadcast %23 : vector<8x1xf32> to vector<8x1024xf32>
    %26 = arith.mulf %25, %24 : vector<8x1024xf32>
    %27 = arith.addf %22, %26 : vector<8x1024xf32>
    %28 = vector.extract_strided_slice %27 {offsets = [0, 0], sizes = [8, 256], strides = [1, 1]} : vector<8x1024xf32> to vector<8x256xf32>
    %29 = vector.extract_strided_slice %27 {offsets = [0, 256], sizes = [8, 256], strides = [1, 1]} : vector<8x1024xf32> to vector<8x256xf32>
    %30 = vector.extract_strided_slice %27 {offsets = [0, 512], sizes = [8, 256], strides = [1, 1]} : vector<8x1024xf32> to vector<8x256xf32>
    %31 = vector.extract_strided_slice %27 {offsets = [0, 768], sizes = [8, 256], strides = [1, 1]} : vector<8x1024xf32> to vector<8x256xf32>
    %c0_12 = arith.constant 0 : index
    %c0_13 = arith.constant 0 : index
    %32 = memref.load %arg7[%c0_12, %c0_13] : memref<4x4xf32, #tpu.memory_space<smem>>
    %33 = vector.broadcast %32 : f32 to vector<8x256xf32>
    %34 = arith.mulf %28, %33 : vector<8x256xf32>
    %c1 = arith.constant 1 : index
    %c0_14 = arith.constant 0 : index
    %35 = memref.load %arg7[%c1, %c0_14] : memref<4x4xf32, #tpu.memory_space<smem>>
    %36 = vector.broadcast %35 : f32 to vector<8x256xf32>
    %37 = arith.mulf %29, %36 : vector<8x256xf32>
    %38 = arith.addf %34, %37 : vector<8x256xf32>
    %c2 = arith.constant 2 : index
    %c0_15 = arith.constant 0 : index
    %39 = memref.load %arg7[%c2, %c0_15] : memref<4x4xf32, #tpu.memory_space<smem>>
    %40 = vector.broadcast %39 : f32 to vector<8x256xf32>
    %41 = arith.mulf %30, %40 : vector<8x256xf32>
    %42 = arith.addf %38, %41 : vector<8x256xf32>
    %c3 = arith.constant 3 : index
    %c0_16 = arith.constant 0 : index
    %43 = memref.load %arg7[%c3, %c0_16] : memref<4x4xf32, #tpu.memory_space<smem>>
    %44 = vector.broadcast %43 : f32 to vector<8x256xf32>
    %45 = arith.mulf %31, %44 : vector<8x256xf32>
    %46 = arith.addf %42, %45 : vector<8x256xf32>
    %c0_17 = arith.constant 0 : index
    %47 = memref.load %arg8[%c0_17] : memref<4xf32, #tpu.memory_space<smem>>
    %48 = vector.broadcast %47 : f32 to vector<8x256xf32>
    %49 = arith.addf %46, %48 : vector<8x256xf32>
    %50 = arith.negf %49 : vector<8x256xf32>
    %51 = math.exp %50 : vector<8x256xf32>
    %cst_18 = arith.constant 1.000000e+00 : f32
    %52 = vector.broadcast %cst_18 : f32 to vector<8x256xf32>
    %53 = arith.addf %52, %51 : vector<8x256xf32>
    %54 = arith.divf %52, %53 : vector<8x256xf32>
    %c0_19 = arith.constant 0 : index
    %c0_20 = arith.constant 0 : index
    %55 = vector.load %arg11[%c0_19, %c0_20] : memref<8x1024xf32, #tpu.memory_space<vmem>>, vector<8x256xf32>
    tpu.vector_store %arg11[%c0_19, %c0_20], %54 {strides = array<i32>} : memref<8x1024xf32, #tpu.memory_space<vmem>>, vector<8x256xf32>,
    %c0_21 = arith.constant 0 : index
    %c1_22 = arith.constant 1 : index
    %56 = memref.load %arg7[%c0_21, %c1_22] : memref<4x4xf32, #tpu.memory_space<smem>>
    %57 = vector.broadcast %56 : f32 to vector<8x256xf32>
    %58 = arith.mulf %28, %57 : vector<8x256xf32>
    %c1_23 = arith.constant 1 : index
    %c1_24 = arith.constant 1 : index
    %59 = memref.load %arg7[%c1_23, %c1_24] : memref<4x4xf32, #tpu.memory_space<smem>>
    %60 = vector.broadcast %59 : f32 to vector<8x256xf32>
    %61 = arith.mulf %29, %60 : vector<8x256xf32>
    %62 = arith.addf %58, %61 : vector<8x256xf32>
    %c2_25 = arith.constant 2 : index
    %c1_26 = arith.constant 1 : index
    %63 = memref.load %arg7[%c2_25, %c1_26] : memref<4x4xf32, #tpu.memory_space<smem>>
    %64 = vector.broadcast %63 : f32 to vector<8x256xf32>
    %65 = arith.mulf %30, %64 : vector<8x256xf32>
    %66 = arith.addf %62, %65 : vector<8x256xf32>
    %c3_27 = arith.constant 3 : index
    %c1_28 = arith.constant 1 : index
    %67 = memref.load %arg7[%c3_27, %c1_28] : memref<4x4xf32, #tpu.memory_space<smem>>
    %68 = vector.broadcast %67 : f32 to vector<8x256xf32>
    %69 = arith.mulf %31, %68 : vector<8x256xf32>
    %70 = arith.addf %66, %69 : vector<8x256xf32>
    %c1_29 = arith.constant 1 : index
    %71 = memref.load %arg8[%c1_29] : memref<4xf32, #tpu.memory_space<smem>>
    %72 = vector.broadcast %71 : f32 to vector<8x256xf32>
    %73 = arith.addf %70, %72 : vector<8x256xf32>
    %74 = arith.negf %73 : vector<8x256xf32>
    %75 = math.exp %74 : vector<8x256xf32>
    %cst_30 = arith.constant 1.000000e+00 : f32
    %76 = vector.broadcast %cst_30 : f32 to vector<8x256xf32>
    %77 = arith.addf %76, %75 : vector<8x256xf32>
    %78 = arith.divf %76, %77 : vector<8x256xf32>
    %c0_31 = arith.constant 0 : index
    %c256 = arith.constant 256 : index
    %79 = vector.load %arg11[%c0_31, %c256] : memref<8x1024xf32, #tpu.memory_space<vmem>>, vector<8x256xf32>
    tpu.vector_store %arg11[%c0_31, %c256], %78 {strides = array<i32>} : memref<8x1024xf32, #tpu.memory_space<vmem>>, vector<8x256xf32>,
    %c0_32 = arith.constant 0 : index
    %c2_33 = arith.constant 2 : index
    %80 = memref.load %arg7[%c0_32, %c2_33] : memref<4x4xf32, #tpu.memory_space<smem>>
    %81 = vector.broadcast %80 : f32 to vector<8x256xf32>
    %82 = arith.mulf %28, %81 : vector<8x256xf32>
    %c1_34 = arith.constant 1 : index
    %c2_35 = arith.constant 2 : index
    %83 = memref.load %arg7[%c1_34, %c2_35] : memref<4x4xf32, #tpu.memory_space<smem>>
    %84 = vector.broadcast %83 : f32 to vector<8x256xf32>
    %85 = arith.mulf %29, %84 : vector<8x256xf32>
    %86 = arith.addf %82, %85 : vector<8x256xf32>
    %c2_36 = arith.constant 2 : index
    %c2_37 = arith.constant 2 : index
    %87 = memref.load %arg7[%c2_36, %c2_37] : memref<4x4xf32, #tpu.memory_space<smem>>
    %88 = vector.broadcast %87 : f32 to vector<8x256xf32>
    %89 = arith.mulf %30, %88 : vector<8x256xf32>
    %90 = arith.addf %86, %89 : vector<8x256xf32>
    %c3_38 = arith.constant 3 : index
    %c2_39 = arith.constant 2 : index
    %91 = memref.load %arg7[%c3_38, %c2_39] : memref<4x4xf32, #tpu.memory_space<smem>>
    %92 = vector.broadcast %91 : f32 to vector<8x256xf32>
    %93 = arith.mulf %31, %92 : vector<8x256xf32>
    %94 = arith.addf %90, %93 : vector<8x256xf32>
    %c2_40 = arith.constant 2 : index
    %95 = memref.load %arg8[%c2_40] : memref<4xf32, #tpu.memory_space<smem>>
    %96 = vector.broadcast %95 : f32 to vector<8x256xf32>
    %97 = arith.addf %94, %96 : vector<8x256xf32>
    %98 = arith.negf %97 : vector<8x256xf32>
    %99 = math.exp %98 : vector<8x256xf32>
    %cst_41 = arith.constant 1.000000e+00 : f32
    %100 = vector.broadcast %cst_41 : f32 to vector<8x256xf32>
    %101 = arith.addf %100, %99 : vector<8x256xf32>
    %102 = arith.divf %100, %101 : vector<8x256xf32>
    %c0_42 = arith.constant 0 : index
    %c512 = arith.constant 512 : index
    %103 = vector.load %arg11[%c0_42, %c512] : memref<8x1024xf32, #tpu.memory_space<vmem>>, vector<8x256xf32>
    tpu.vector_store %arg11[%c0_42, %c512], %102 {strides = array<i32>} : memref<8x1024xf32, #tpu.memory_space<vmem>>, vector<8x256xf32>,
    %c0_43 = arith.constant 0 : index
    %c3_44 = arith.constant 3 : index
    %104 = memref.load %arg7[%c0_43, %c3_44] : memref<4x4xf32, #tpu.memory_space<smem>>
    %105 = vector.broadcast %104 : f32 to vector<8x256xf32>
    %106 = arith.mulf %28, %105 : vector<8x256xf32>
    %c1_45 = arith.constant 1 : index
    %c3_46 = arith.constant 3 : index
    %107 = memref.load %arg7[%c1_45, %c3_46] : memref<4x4xf32, #tpu.memory_space<smem>>
    %108 = vector.broadcast %107 : f32 to vector<8x256xf32>
    %109 = arith.mulf %29, %108 : vector<8x256xf32>
    %110 = arith.addf %106, %109 : vector<8x256xf32>
    %c2_47 = arith.constant 2 : index
    %c3_48 = arith.constant 3 : index
    %111 = memref.load %arg7[%c2_47, %c3_48] : memref<4x4xf32, #tpu.memory_space<smem>>
    %112 = vector.broadcast %111 : f32 to vector<8x256xf32>
    %113 = arith.mulf %30, %112 : vector<8x256xf32>
    %114 = arith.addf %110, %113 : vector<8x256xf32>
    %c3_49 = arith.constant 3 : index
    %c3_50 = arith.constant 3 : index
    %115 = memref.load %arg7[%c3_49, %c3_50] : memref<4x4xf32, #tpu.memory_space<smem>>
    %116 = vector.broadcast %115 : f32 to vector<8x256xf32>
    %117 = arith.mulf %31, %116 : vector<8x256xf32>
    %118 = arith.addf %114, %117 : vector<8x256xf32>
    %c3_51 = arith.constant 3 : index
    %119 = memref.load %arg8[%c3_51] : memref<4xf32, #tpu.memory_space<smem>>
    %120 = vector.broadcast %119 : f32 to vector<8x256xf32>
    %121 = arith.addf %118, %120 : vector<8x256xf32>
    %122 = arith.negf %121 : vector<8x256xf32>
    %123 = math.exp %122 : vector<8x256xf32>
    %cst_52 = arith.constant 1.000000e+00 : f32
    %124 = vector.broadcast %cst_52 : f32 to vector<8x256xf32>
    %125 = arith.addf %124, %123 : vector<8x256xf32>
    %126 = arith.divf %124, %125 : vector<8x256xf32>
    %c0_53 = arith.constant 0 : index
    %c768 = arith.constant 768 : index
    %127 = vector.load %arg11[%c0_53, %c768] : memref<8x1024xf32, #tpu.memory_space<vmem>>, vector<8x256xf32>
    tpu.vector_store %arg11[%c0_53, %c768], %126 {strides = array<i32>} : memref<8x1024xf32, #tpu.memory_space<vmem>>, vector<8x256xf32>,
    %c0_54 = arith.constant 0 : index
    %c0_55 = arith.constant 0 : index
    %128 = vector.load %arg4[%c0_54, %c0_55] : memref<8x1xf32, #tpu.memory_space<vmem>>, vector<8x1xf32>
    %c0_56 = arith.constant 0 : index
    %c0_57 = arith.constant 0 : index
    %129 = vector.load %arg6[%c0_56, %c0_57] : memref<8x1024xf32, #tpu.memory_space<vmem>>, vector<8x1024xf32>
    %130 = vector.broadcast %128 : vector<8x1xf32> to vector<8x1024xf32>
    %131 = arith.mulf %130, %129 : vector<8x1024xf32>
    %132 = arith.addf %22, %131 : vector<8x1024xf32>
    %133 = vector.extract_strided_slice %132 {offsets = [0, 0], sizes = [8, 256], strides = [1, 1]} : vector<8x1024xf32> to vector<8x256xf32>
    %134 = vector.extract_strided_slice %132 {offsets = [0, 256], sizes = [8, 256], strides = [1, 1]} : vector<8x1024xf32> to vector<8x256xf32>
    %135 = vector.extract_strided_slice %132 {offsets = [0, 512], sizes = [8, 256], strides = [1, 1]} : vector<8x1024xf32> to vector<8x256xf32>
    %136 = vector.extract_strided_slice %132 {offsets = [0, 768], sizes = [8, 256], strides = [1, 1]} : vector<8x1024xf32> to vector<8x256xf32>
    %c0_58 = arith.constant 0 : index
    %c0_59 = arith.constant 0 : index
    %137 = memref.load %arg9[%c0_58, %c0_59] : memref<4x4xf32, #tpu.memory_space<smem>>
    %138 = vector.broadcast %137 : f32 to vector<8x256xf32>
    %139 = arith.mulf %133, %138 : vector<8x256xf32>
    %c1_60 = arith.constant 1 : index
    %c0_61 = arith.constant 0 : index
    %140 = memref.load %arg9[%c1_60, %c0_61] : memref<4x4xf32, #tpu.memory_space<smem>>
    %141 = vector.broadcast %140 : f32 to vector<8x256xf32>
    %142 = arith.mulf %134, %141 : vector<8x256xf32>
    %143 = arith.addf %139, %142 : vector<8x256xf32>
    %c2_62 = arith.constant 2 : index
    %c0_63 = arith.constant 0 : index
    %144 = memref.load %arg9[%c2_62, %c0_63] : memref<4x4xf32, #tpu.memory_space<smem>>
    %145 = vector.broadcast %144 : f32 to vector<8x256xf32>
    %146 = arith.mulf %135, %145 : vector<8x256xf32>
    %147 = arith.addf %143, %146 : vector<8x256xf32>
    %c3_64 = arith.constant 3 : index
    %c0_65 = arith.constant 0 : index
    %148 = memref.load %arg9[%c3_64, %c0_65] : memref<4x4xf32, #tpu.memory_space<smem>>
    %149 = vector.broadcast %148 : f32 to vector<8x256xf32>
    %150 = arith.mulf %136, %149 : vector<8x256xf32>
    %151 = arith.addf %147, %150 : vector<8x256xf32>
    %c0_66 = arith.constant 0 : index
    %152 = memref.load %arg10[%c0_66] : memref<4xf32, #tpu.memory_space<smem>>
    %153 = vector.broadcast %152 : f32 to vector<8x256xf32>
    %154 = arith.addf %151, %153 : vector<8x256xf32>
    %155 = arith.negf %154 : vector<8x256xf32>
    %156 = math.exp %155 : vector<8x256xf32>
    %cst_67 = arith.constant 1.000000e+00 : f32
    %157 = vector.broadcast %cst_67 : f32 to vector<8x256xf32>
    %158 = arith.addf %157, %156 : vector<8x256xf32>
    %159 = arith.divf %157, %158 : vector<8x256xf32>
    %c0_68 = arith.constant 0 : index
    %c0_69 = arith.constant 0 : index
    %160 = vector.load %arg12[%c0_68, %c0_69] : memref<8x1024xf32, #tpu.memory_space<vmem>>, vector<8x256xf32>
    tpu.vector_store %arg12[%c0_68, %c0_69], %159 {strides = array<i32>} : memref<8x1024xf32, #tpu.memory_space<vmem>>, vector<8x256xf32>,
    %c0_70 = arith.constant 0 : index
    %c1_71 = arith.constant 1 : index
    %161 = memref.load %arg9[%c0_70, %c1_71] : memref<4x4xf32, #tpu.memory_space<smem>>
    %162 = vector.broadcast %161 : f32 to vector<8x256xf32>
    %163 = arith.mulf %133, %162 : vector<8x256xf32>
    %c1_72 = arith.constant 1 : index
    %c1_73 = arith.constant 1 : index
    %164 = memref.load %arg9[%c1_72, %c1_73] : memref<4x4xf32, #tpu.memory_space<smem>>
    %165 = vector.broadcast %164 : f32 to vector<8x256xf32>
    %166 = arith.mulf %134, %165 : vector<8x256xf32>
    %167 = arith.addf %163, %166 : vector<8x256xf32>
    %c2_74 = arith.constant 2 : index
    %c1_75 = arith.constant 1 : index
    %168 = memref.load %arg9[%c2_74, %c1_75] : memref<4x4xf32, #tpu.memory_space<smem>>
    %169 = vector.broadcast %168 : f32 to vector<8x256xf32>
    %170 = arith.mulf %135, %169 : vector<8x256xf32>
    %171 = arith.addf %167, %170 : vector<8x256xf32>
    %c3_76 = arith.constant 3 : index
    %c1_77 = arith.constant 1 : index
    %172 = memref.load %arg9[%c3_76, %c1_77] : memref<4x4xf32, #tpu.memory_space<smem>>
    %173 = vector.broadcast %172 : f32 to vector<8x256xf32>
    %174 = arith.mulf %136, %173 : vector<8x256xf32>
    %175 = arith.addf %171, %174 : vector<8x256xf32>
    %c1_78 = arith.constant 1 : index
    %176 = memref.load %arg10[%c1_78] : memref<4xf32, #tpu.memory_space<smem>>
    %177 = vector.broadcast %176 : f32 to vector<8x256xf32>
    %178 = arith.addf %175, %177 : vector<8x256xf32>
    %179 = arith.negf %178 : vector<8x256xf32>
    %180 = math.exp %179 : vector<8x256xf32>
    %cst_79 = arith.constant 1.000000e+00 : f32
    %181 = vector.broadcast %cst_79 : f32 to vector<8x256xf32>
    %182 = arith.addf %181, %180 : vector<8x256xf32>
    %183 = arith.divf %181, %182 : vector<8x256xf32>
    %c0_80 = arith.constant 0 : index
    %c256_81 = arith.constant 256 : index
    %184 = vector.load %arg12[%c0_80, %c256_81] : memref<8x1024xf32, #tpu.memory_space<vmem>>, vector<8x256xf32>
    tpu.vector_store %arg12[%c0_80, %c256_81], %183 {strides = array<i32>} : memref<8x1024xf32, #tpu.memory_space<vmem>>, vector<8x256xf32>,
    %c0_82 = arith.constant 0 : index
    %c2_83 = arith.constant 2 : index
    %185 = memref.load %arg9[%c0_82, %c2_83] : memref<4x4xf32, #tpu.memory_space<smem>>
    %186 = vector.broadcast %185 : f32 to vector<8x256xf32>
    %187 = arith.mulf %133, %186 : vector<8x256xf32>
    %c1_84 = arith.constant 1 : index
    %c2_85 = arith.constant 2 : index
    %188 = memref.load %arg9[%c1_84, %c2_85] : memref<4x4xf32, #tpu.memory_space<smem>>
    %189 = vector.broadcast %188 : f32 to vector<8x256xf32>
    %190 = arith.mulf %134, %189 : vector<8x256xf32>
    %191 = arith.addf %187, %190 : vector<8x256xf32>
    %c2_86 = arith.constant 2 : index
    %c2_87 = arith.constant 2 : index
    %192 = memref.load %arg9[%c2_86, %c2_87] : memref<4x4xf32, #tpu.memory_space<smem>>
    %193 = vector.broadcast %192 : f32 to vector<8x256xf32>
    %194 = arith.mulf %135, %193 : vector<8x256xf32>
    %195 = arith.addf %191, %194 : vector<8x256xf32>
    %c3_88 = arith.constant 3 : index
    %c2_89 = arith.constant 2 : index
    %196 = memref.load %arg9[%c3_88, %c2_89] : memref<4x4xf32, #tpu.memory_space<smem>>
    %197 = vector.broadcast %196 : f32 to vector<8x256xf32>
    %198 = arith.mulf %136, %197 : vector<8x256xf32>
    %199 = arith.addf %195, %198 : vector<8x256xf32>
    %c2_90 = arith.constant 2 : index
    %200 = memref.load %arg10[%c2_90] : memref<4xf32, #tpu.memory_space<smem>>
    %201 = vector.broadcast %200 : f32 to vector<8x256xf32>
    %202 = arith.addf %199, %201 : vector<8x256xf32>
    %203 = arith.negf %202 : vector<8x256xf32>
    %204 = math.exp %203 : vector<8x256xf32>
    %cst_91 = arith.constant 1.000000e+00 : f32
    %205 = vector.broadcast %cst_91 : f32 to vector<8x256xf32>
    %206 = arith.addf %205, %204 : vector<8x256xf32>
    %207 = arith.divf %205, %206 : vector<8x256xf32>
    %c0_92 = arith.constant 0 : index
    %c512_93 = arith.constant 512 : index
    %208 = vector.load %arg12[%c0_92, %c512_93] : memref<8x1024xf32, #tpu.memory_space<vmem>>, vector<8x256xf32>
    tpu.vector_store %arg12[%c0_92, %c512_93], %207 {strides = array<i32>} : memref<8x1024xf32, #tpu.memory_space<vmem>>, vector<8x256xf32>,
    %c0_94 = arith.constant 0 : index
    %c3_95 = arith.constant 3 : index
    %209 = memref.load %arg9[%c0_94, %c3_95] : memref<4x4xf32, #tpu.memory_space<smem>>
    %210 = vector.broadcast %209 : f32 to vector<8x256xf32>
    %211 = arith.mulf %133, %210 : vector<8x256xf32>
    %c1_96 = arith.constant 1 : index
    %c3_97 = arith.constant 3 : index
    %212 = memref.load %arg9[%c1_96, %c3_97] : memref<4x4xf32, #tpu.memory_space<smem>>
    %213 = vector.broadcast %212 : f32 to vector<8x256xf32>
    %214 = arith.mulf %134, %213 : vector<8x256xf32>
    %215 = arith.addf %211, %214 : vector<8x256xf32>
    %c2_98 = arith.constant 2 : index
    %c3_99 = arith.constant 3 : index
    %216 = memref.load %arg9[%c2_98, %c3_99] : memref<4x4xf32, #tpu.memory_space<smem>>
    %217 = vector.broadcast %216 : f32 to vector<8x256xf32>
    %218 = arith.mulf %135, %217 : vector<8x256xf32>
    %219 = arith.addf %215, %218 : vector<8x256xf32>
    %c3_100 = arith.constant 3 : index
    %c3_101 = arith.constant 3 : index
    %220 = memref.load %arg9[%c3_100, %c3_101] : memref<4x4xf32, #tpu.memory_space<smem>>
    %221 = vector.broadcast %220 : f32 to vector<8x256xf32>
    %222 = arith.mulf %136, %221 : vector<8x256xf32>
    %223 = arith.addf %219, %222 : vector<8x256xf32>
    %c3_102 = arith.constant 3 : index
    %224 = memref.load %arg10[%c3_102] : memref<4xf32, #tpu.memory_space<smem>>
    %225 = vector.broadcast %224 : f32 to vector<8x256xf32>
    %226 = arith.addf %223, %225 : vector<8x256xf32>
    %227 = arith.negf %226 : vector<8x256xf32>
    %228 = math.exp %227 : vector<8x256xf32>
    %cst_103 = arith.constant 1.000000e+00 : f32
    %229 = vector.broadcast %cst_103 : f32 to vector<8x256xf32>
    %230 = arith.addf %229, %228 : vector<8x256xf32>
    %231 = arith.divf %229, %230 : vector<8x256xf32>
    %c0_104 = arith.constant 0 : index
    %c768_105 = arith.constant 768 : index
    %232 = vector.load %arg12[%c0_104, %c768_105] : memref<8x1024xf32, #tpu.memory_space<vmem>>, vector<8x256xf32>
    tpu.vector_store %arg12[%c0_104, %c768_105], %231 {strides = array<i32>} : memref<8x1024xf32, #tpu.memory_space<vmem>>, vector<8x256xf32>,
    return
  }
  func.func @transform_0(%arg0: i32) -> (i32, i32) {
    %c0_i32 = arith.constant 0 : i32
    %c0_i32_0 = arith.constant 0 : i32
    return %arg0, %c0_i32 : i32, i32
  }
  func.func @transform_1(%arg0: i32) -> (i32, i32) {
    %c0_i32 = arith.constant 0 : i32
    %c0_i32_0 = arith.constant 0 : i32
    return %arg0, %c0_i32 : i32, i32
  }
  func.func @transform_2(%arg0: i32) -> (i32, i32) {
    %c0_i32 = arith.constant 0 : i32
    %c0_i32_0 = arith.constant 0 : i32
    return %arg0, %c0_i32 : i32, i32
  }
  func.func @transform_3(%arg0: i32) -> (i32, i32) {
    %c0_i32 = arith.constant 0 : i32
    %c0_i32_0 = arith.constant 0 : i32
    return %arg0, %c0_i32 : i32, i32
  }
  func.func @transform_4(%arg0: i32) -> (i32, i32) {
    %c0_i32 = arith.constant 0 : i32
    %c0_i32_0 = arith.constant 0 : i32
    return %arg0, %c0_i32 : i32, i32
  }
  func.func @transform_5(%arg0: i32) -> (i32, i32) {
    %c0_i32 = arith.constant 0 : i32
    %c0_i32_0 = arith.constant 0 : i32
    return %arg0, %c0_i32 : i32, i32
  }
  func.func @transform_6(%arg0: i32) -> (i32, i32) {
    %c0_i32 = arith.constant 0 : i32
    %c0_i32_0 = arith.constant 0 : i32
    %c0_i32_1 = arith.constant 0 : i32
    return %c0_i32, %c0_i32_0 : i32, i32
  }
  func.func @transform_7(%arg0: i32) -> i32 {
    %c0_i32 = arith.constant 0 : i32
    %c0_i32_0 = arith.constant 0 : i32
    return %c0_i32 : i32
  }
  func.func @transform_8(%arg0: i32) -> (i32, i32) {
    %c0_i32 = arith.constant 0 : i32
    %c0_i32_0 = arith.constant 0 : i32
    %c0_i32_1 = arith.constant 0 : i32
    return %c0_i32, %c0_i32_0 : i32, i32
  }
  func.func @transform_9(%arg0: i32) -> i32 {
    %c0_i32 = arith.constant 0 : i32
    %c0_i32_0 = arith.constant 0 : i32
    return %c0_i32 : i32
  }
  func.func @transform_10(%arg0: i32) -> (i32, i32) {
    %c0_i32 = arith.constant 0 : i32
    %c0_i32_0 = arith.constant 0 : i32
    return %arg0, %c0_i32 : i32, i32
  }
  func.func @transform_11(%arg0: i32) -> (i32, i32) {
    %c0_i32 = arith.constant 0 : i32
    %c0_i32_0 = arith.constant 0 : i32
    return %arg0, %c0_i32 : i32, i32
  }
}

</mosaic_0001>

<llo_original>
// kernel: tpu_custom_call.1
$region0: #{tpu_custom_call.1}
  #allocation0 [shape = 'u32[]', space=smem, size = 0x4, offset = 0x4, fixed_abs, tag = 'smem constant byte address 0x4 - core index']
  #allocation1 [shape = 'u32[144,128]{1,0:T(1,128)}', space=vmem, size = 0x12000, scoped, tag = 'internal scratch']
  %s0 = inlined_call_operand.hbm [shape: f32[8,1024], index: 0, kind: input, shape index: {}]
  %s1 = inlined_call_operand.hbm [shape: f32[8,1024], index: 1, kind: input, shape index: {}]
  %s2 = inlined_call_operand.vmem [shape: f32[8,1], index: 2, kind: input, shape index: {}]
  %s3 = inlined_call_operand.vmem [shape: f32[8,1], index: 3, kind: input, shape index: {}]
  %s4 = inlined_call_operand.hbm [shape: f32[8,1024], index: 4, kind: input, shape index: {}]
  %s5 = inlined_call_operand.hbm [shape: f32[8,1024], index: 5, kind: input, shape index: {}]
  %s6 = inlined_call_operand.vmem [shape: f32[4,4], index: 6, kind: input, shape index: {}]
  %s7 = inlined_call_operand.vmem [shape: f32[4], index: 7, kind: input, shape index: {}]
  %s8 = inlined_call_operand.vmem [shape: f32[4,4], index: 8, kind: input, shape index: {}]
  %s9 = inlined_call_operand.vmem [shape: f32[4], index: 9, kind: input, shape index: {}]
  %s10 = inlined_call_operand.hbm [shape: f32[8,1024], index: 10, kind: output, shape index: {0}]
  %s11 = inlined_call_operand.hbm [shape: f32[8,1024], index: 11, kind: output, shape index: {1}]
  %12 = xla_tuple %s10, %s11
  %s13 = sld [smem:[#allocation0]]
  $region90: #{tpu_custom_call.1} parent=0
    _
  %s15 = ssub.s32 1, %s13
  %s16 = scalar_select 0, %s15, %s13
  $region1: #{tpu_custom_call.1} parent=0
    #allocation2 [shape = 'u8[32768]{0}', space=vmem, size = 0x8000, scoped, tag = 'input window, operand 0, single buffered']
    #allocation3 [shape = 's32[1]{0}', space=sflag, size = 0x4, scoped, tag = 'scoped memory for tpu_custom_call.1']
    #allocation4 [shape = 's32[1]{0}', space=sflag, size = 0x4, scoped, tag = 'scoped memory for tpu_custom_call.1']
    #allocation5 [shape = 's32[1]{0}', space=sflag, size = 0x4, scoped, tag = 'scoped memory for tpu_custom_call.1']
    #allocation6 [shape = 'u8[32768]{0}', space=vmem, size = 0x8000, scoped, tag = 'input window, operand 1, single buffered']
    #allocation7 [shape = 's32[1]{0}', space=sflag, size = 0x4, scoped, tag = 'scoped memory for tpu_custom_call.1']
    #allocation8 [shape = 'u8[32768]{0}', space=vmem, size = 0x8000, scoped, tag = 'input window, operand 4, single buffered']
    #allocation9 [shape = 'u8[32768]{0}', space=vmem, size = 0x8000, scoped, tag = 'input window, operand 5, single buffered']
    #allocation10 [shape = 's32[1]{0}', space=sflag, size = 0x4, scoped, tag = 'scoped memory for tpu_custom_call.1']
    #allocation11 [shape = 'u8[2048]{0}', space=smem, size = 0x800, scoped, tag = 'input window, operand 6, single buffered']
    #allocation12 [shape = 'u8[512]{0}', space=smem, size = 0x200, scoped, tag = 'input window, operand 7, single buffered']
    #allocation13 [shape = 's32[1]{0}', space=sflag, size = 0x4, scoped, tag = 'scoped memory for tpu_custom_call.1']
    #allocation14 [shape = 'u8[2048]{0}', space=smem, size = 0x800, scoped, tag = 'input window, operand 8, single buffered']
    #allocation15 [shape = 'u8[512]{0}', space=smem, size = 0x200, scoped, tag = 'input window, operand 9, single buffered']
    #allocation16 [shape = 's32[1]{0}', space=sflag, size = 0x4, scoped, tag = 'scoped memory for tpu_custom_call.1']
    #allocation17 [shape = 'u8[32768]{0}', space=vmem, size = 0x8000, scoped, tag = 'output window, operand 0, single buffered']
    #allocation18 [shape = 'u8[32768]{0}', space=vmem, size = 0x8000, scoped, tag = 'output window, operand 1, single buffered']
    #allocation19 [shape = 's32[1]{0}', space=sflag, size = 0x4, scoped, tag = 'scoped memory for tpu_custom_call.1']
    %17 = vsyncpa [#allocation3], 0
    %18 = vsyncpa [#allocation7], 0
    %19 = vsyncpa [#allocation10], 0
    %20 = vsyncpa [#allocation5], 0
    %21 = vsyncpa [#allocation13], 0
    %22 = vsyncpa [#allocation16], 0
    %23 = vsyncpa [#allocation4], 0
    %24 = vsyncpa [#allocation19], 0
    // Predicated region
    $region2: #{tpu_custom_call.1} parent=1 // pred_check
      _
    $region3: #{tpu_custom_call.1} parent=1 // pred_check_branch
      %26 = sbr.rel (0) target = $region5
    $region4: #{tpu_custom_call.1} parent=1 // pred_region
      %s28 = ssub.s32 1024, 1024
      %29 = vsyncadd [#allocation3], %s28
      %s31 = sshll.u32 [#allocation2], 4
      %s32 = int_to_ptr.vmem [resolvable:$true] %s31
      %34 = dma.hbm_to_vmem [thread:$0]  %s0, 1024, %s32, [#allocation3]
    $region5: #{tpu_custom_call.1} parent=1 // pred_fallthru
      _
    // Predicated region
    $region6: #{tpu_custom_call.1} parent=1 // pred_check
      _
    $region7: #{tpu_custom_call.1} parent=1 // pred_check_branch
      %36 = sbr.rel (0) target = $region9
    $region8: #{tpu_custom_call.1} parent=1 // pred_region
      %s38 = ssub.s32 1024, 1024
      %39 = vsyncadd [#allocation7], %s38
      %s41 = sshll.u32 [#allocation6], 4
      %s42 = int_to_ptr.vmem [resolvable:$true] %s41
      %44 = dma.hbm_to_vmem [thread:$0]  %s1, 1024, %s42, [#allocation7]
    $region9: #{tpu_custom_call.1} parent=1 // pred_fallthru
      _
    // Predicated region
    $region10: #{tpu_custom_call.1} parent=1 // pred_check
      _
    $region11: #{tpu_custom_call.1} parent=1 // pred_check_branch
      %46 = sbr.rel (0) target = $region13
    $region12: #{tpu_custom_call.1} parent=1 // pred_region
      _
    $region13: #{tpu_custom_call.1} parent=1 // pred_fallthru
      _
    // Predicated region
    $region14: #{tpu_custom_call.1} parent=1 // pred_check
      _
    $region15: #{tpu_custom_call.1} parent=1 // pred_check_branch
      %48 = sbr.rel (0) target = $region17
    $region16: #{tpu_custom_call.1} parent=1 // pred_region
      _
    $region17: #{tpu_custom_call.1} parent=1 // pred_fallthru
      _
    // Predicated region
    $region18: #{tpu_custom_call.1} parent=1 // pred_check
      _
    $region19: #{tpu_custom_call.1} parent=1 // pred_check_branch
      %50 = sbr.rel (0) target = $region21
    $region20: #{tpu_custom_call.1} parent=1 // pred_region
      %s52 = ssub.s32 1024, 1024
      %53 = vsyncadd [#allocation7], %s52
      %s55 = sshll.u32 [#allocation8], 4
      %s56 = int_to_ptr.vmem [resolvable:$true] %s55
      %58 = dma.hbm_to_vmem [thread:$0]  %s4, 1024, %s56, [#allocation7]
    $region21: #{tpu_custom_call.1} parent=1 // pred_fallthru
      _
    // Predicated region
    $region22: #{tpu_custom_call.1} parent=1 // pred_check
      _
    $region23: #{tpu_custom_call.1} parent=1 // pred_check_branch
      %60 = sbr.rel (0) target = $region25
    $region24: #{tpu_custom_call.1} parent=1 // pred_region
      %s62 = ssub.s32 1024, 1024
      %63 = vsyncadd [#allocation10], %s62
      %s65 = sshll.u32 [#allocation9], 4
      %s66 = int_to_ptr.vmem [resolvable:$true] %s65
      %68 = dma.hbm_to_vmem [thread:$0]  %s5, 1024, %s66, [#allocation10]
    $region25: #{tpu_custom_call.1} parent=1 // pred_fallthru
      _
    // Predicated region
    $region26: #{tpu_custom_call.1} parent=1 // pred_check
      _
    $region27: #{tpu_custom_call.1} parent=1 // pred_check_branch
      %70 = sbr.rel (0) target = $region29
    $region28: #{tpu_custom_call.1} parent=1 // pred_region
      %s72 = ssub.s32 64, 64
      %73 = vsyncadd [#allocation5], %s72
      %s75 = sshll.u32 %s6, 4
      %s76 = int_to_ptr.vmem [resolvable:$true] %s75
      %78 = dma.vmem_to_smem %s76, 64, [#allocation11], [#allocation5]
    $region29: #{tpu_custom_call.1} parent=1 // pred_fallthru
      _
    // Predicated region
    $region30: #{tpu_custom_call.1} parent=1 // pred_check
      _
    $region31: #{tpu_custom_call.1} parent=1 // pred_check_branch
      %80 = sbr.rel (0) target = $region33
    $region32: #{tpu_custom_call.1} parent=1 // pred_region
      %s82 = ssub.s32 16, 16
      %83 = vsyncadd [#allocation13], %s82
      %s85 = sshll.u32 %s7, 4
      %s86 = int_to_ptr.vmem [resolvable:$true] %s85
      %88 = dma.vmem_to_smem %s86, 16, [#allocation12], [#allocation13]
    $region33: #{tpu_custom_call.1} parent=1 // pred_fallthru
      _
    // Predicated region
    $region34: #{tpu_custom_call.1} parent=1 // pred_check
      _
    $region35: #{tpu_custom_call.1} parent=1 // pred_check_branch
      %90 = sbr.rel (0) target = $region37
    $region36: #{tpu_custom_call.1} parent=1 // pred_region
      %s92 = ssub.s32 64, 64
      %93 = vsyncadd [#allocation13], %s92
      %s95 = sshll.u32 %s8, 4
      %s96 = int_to_ptr.vmem [resolvable:$true] %s95
      %98 = dma.vmem_to_smem %s96, 64, [#allocation14], [#allocation13]
    $region37: #{tpu_custom_call.1} parent=1 // pred_fallthru
      _
    // Predicated region
    $region38: #{tpu_custom_call.1} parent=1 // pred_check
      _
    $region39: #{tpu_custom_call.1} parent=1 // pred_check_branch
      %100 = sbr.rel (0) target = $region41
    $region40: #{tpu_custom_call.1} parent=1 // pred_region
      %s102 = ssub.s32 16, 16
      %103 = vsyncadd [#allocation16], %s102
      %s105 = sshll.u32 %s9, 4
      %s106 = int_to_ptr.vmem [resolvable:$true] %s105
      %108 = dma.vmem_to_smem %s106, 16, [#allocation15], [#allocation16]
    $region41: #{tpu_custom_call.1} parent=1 // pred_fallthru
      _
    // Predicated region
    $region42: #{tpu_custom_call.1} parent=1 // pred_check
      _
    $region43: #{tpu_custom_call.1} parent=1 // pred_check_branch
      %110 = sbr.rel (0) target = $region45
    $region44: #{tpu_custom_call.1} parent=1 // pred_region
      %111 = dma.done [#allocation3], 1024
    $region45: #{tpu_custom_call.1} parent=1 // pred_fallthru
      _
    // Predicated region
    $region46: #{tpu_custom_call.1} parent=1 // pred_check
      _
    $region47: #{tpu_custom_call.1} parent=1 // pred_check_branch
      %113 = sbr.rel (0) target = $region49
    $region48: #{tpu_custom_call.1} parent=1 // pred_region
      %114 = dma.done [#allocation7], 1024
    $region49: #{tpu_custom_call.1} parent=1 // pred_fallthru
      _
    // Predicated region
    $region50: #{tpu_custom_call.1} parent=1 // pred_check
      _
    $region51: #{tpu_custom_call.1} parent=1 // pred_check_branch
      %116 = sbr.rel (0) target = $region53
    $region52: #{tpu_custom_call.1} parent=1 // pred_region
      %117 = dma.done [#allocation7], 1024
    $region53: #{tpu_custom_call.1} parent=1 // pred_fallthru
      _
    // Predicated region
    $region54: #{tpu_custom_call.1} parent=1 // pred_check
      _
    $region55: #{tpu_custom_call.1} parent=1 // pred_check_branch
      %119 = sbr.rel (0) target = $region57
    $region56: #{tpu_custom_call.1} parent=1 // pred_region
      %120 = dma.done [#allocation10], 1024
    $region57: #{tpu_custom_call.1} parent=1 // pred_fallthru
      _
    // Predicated region
    $region58: #{tpu_custom_call.1} parent=1 // pred_check
      _
    $region59: #{tpu_custom_call.1} parent=1 // pred_check_branch
      %122 = sbr.rel (0) target = $region61
    $region60: #{tpu_custom_call.1} parent=1 // pred_region
      %123 = dma.done [#allocation5], 64
    $region61: #{tpu_custom_call.1} parent=1 // pred_fallthru
      _
    // Predicated region
    $region62: #{tpu_custom_call.1} parent=1 // pred_check
      _
    $region63: #{tpu_custom_call.1} parent=1 // pred_check_branch
      %125 = sbr.rel (0) target = $region65
    $region64: #{tpu_custom_call.1} parent=1 // pred_region
      %126 = dma.done [#allocation13], 16
    $region65: #{tpu_custom_call.1} parent=1 // pred_fallthru
      _
    // Predicated region
    $region66: #{tpu_custom_call.1} parent=1 // pred_check
      _
    $region67: #{tpu_custom_call.1} parent=1 // pred_check_branch
      %128 = sbr.rel (0) target = $region69
    $region68: #{tpu_custom_call.1} parent=1 // pred_region
      %129 = dma.done [#allocation13], 64
    $region69: #{tpu_custom_call.1} parent=1 // pred_fallthru
      _
    // Predicated region
    $region70: #{tpu_custom_call.1} parent=1 // pred_check
      _
    $region71: #{tpu_custom_call.1} parent=1 // pred_check_branch
      %131 = sbr.rel (0) target = $region73
    $region72: #{tpu_custom_call.1} parent=1 // pred_region
      %132 = dma.done [#allocation16], 16
    $region73: #{tpu_custom_call.1} parent=1 // pred_fallthru
      _
    %133 = sfence
    %v134 = vld [vmem:[#allocation2] sm:$0xff]
    %v135 = vld [vmem:[#allocation2 + $0x8] sm:$0xff]
    %v136 = vld [vmem:[#allocation2 + $0x10] sm:$0xff]
    %v137 = vld [vmem:[#allocation2 + $0x18] sm:$0xff]
    %v138 = vld [vmem:[#allocation2 + $0x20] sm:$0xff]
    %v139 = vld [vmem:[#allocation2 + $0x28] sm:$0xff]
    %v140 = vld [vmem:[#allocation2 + $0x30] sm:$0xff]
    %v141 = vld [vmem:[#allocation2 + $0x38] sm:$0xff]
    %v142 = vld [vmem:[#allocation6] sm:$0xff]
    %v143 = vld [vmem:[#allocation6 + $0x8] sm:$0xff]
    %v144 = vld [vmem:[#allocation6 + $0x10] sm:$0xff]
    %v145 = vld [vmem:[#allocation6 + $0x18] sm:$0xff]
    %v146 = vld [vmem:[#allocation6 + $0x20] sm:$0xff]
    %v147 = vld [vmem:[#allocation6 + $0x28] sm:$0xff]
    %v148 = vld [vmem:[#allocation6 + $0x30] sm:$0xff]
    %v149 = vld [vmem:[#allocation6 + $0x38] sm:$0xff]
    %v150 = vmul.f32 %v134, %v134
    %v151 = vmul.f32 %v135, %v135
    %v152 = vmul.f32 %v136, %v136
    %v153 = vmul.f32 %v137, %v137
    %v154 = vmul.f32 %v138, %v138
    %v155 = vmul.f32 %v139, %v139
    %v156 = vmul.f32 %v140, %v140
    %v157 = vmul.f32 %v141, %v141
    %v158 = vadd.f32 %v150, %v151
    %v159 = vadd.f32 %v158, %v152
    %v160 = vadd.f32 %v159, %v153
    %v161 = vadd.f32 %v160, %v154
    %v162 = vadd.f32 %v161, %v155
    %v163 = vadd.f32 %v162, %v156
    %v164 = vadd.f32 %v163, %v157
    %165 = vadd.xlane.f32.xlu0 %v164
    %v166 = vpop.xlane.xlu0 %165
    %v167 = vrcp.pop 1024.0
    %v168 = vmul.f32 %v166, %v167
    %v169 = vrsqrt.pop %v168
    %v170 = vmul.f32 %v169, 0.70710677
    %v171 = vmul.f32 %v142, %v142
    %v172 = vmul.f32 %v143, %v143
    %v173 = vmul.f32 %v144, %v144
    %v174 = vmul.f32 %v145, %v145
    %v175 = vmul.f32 %v146, %v146
    %v176 = vmul.f32 %v147, %v147
    %v177 = vmul.f32 %v148, %v148
    %v178 = vmul.f32 %v149, %v149
    %v179 = vadd.f32 %v171, %v172
    %v180 = vadd.f32 %v179, %v173
    %v181 = vadd.f32 %v180, %v174
    %v182 = vadd.f32 %v181, %v175
    %v183 = vadd.f32 %v182, %v176
    %v184 = vadd.f32 %v183, %v177
    %v185 = vadd.f32 %v184, %v178
    %186 = vadd.xlane.f32.xlu0 %v185
    %v187 = vpop.xlane.xlu0 %186
    %v188 = vmul.f32 %v187, %v167
    %v189 = vrsqrt.pop %v188
    %v190 = vmul.f32 %v189, 0.70710677
    %v191 = vmul.f32 %v134, %v170
    %v192 = vmul.f32 %v135, %v170
    %v193 = vmul.f32 %v136, %v170
    %v194 = vmul.f32 %v137, %v170
    %v195 = vmul.f32 %v138, %v170
    %v196 = vmul.f32 %v139, %v170
    %v197 = vmul.f32 %v140, %v170
    %v198 = vmul.f32 %v141, %v170
    %v199 = vmul.f32 %v142, %v190
    %v200 = vmul.f32 %v143, %v190
    %v201 = vmul.f32 %v144, %v190
    %v202 = vmul.f32 %v145, %v190
    %v203 = vmul.f32 %v146, %v190
    %v204 = vmul.f32 %v147, %v190
    %v205 = vmul.f32 %v148, %v190
    %v206 = vmul.f32 %v149, %v190
    %v207 = vadd.f32 %v191, %v199
    %v208 = vadd.f32 %v192, %v200
    %v209 = vadd.f32 %v193, %v201
    %v210 = vadd.f32 %v194, %v202
    %v211 = vadd.f32 %v195, %v203
    %v212 = vadd.f32 %v196, %v204
    %v213 = vadd.f32 %v197, %v205
    %v214 = vadd.f32 %v198, %v206
    %v215 = vld [vmem:[%s2] sm:$0xff]
    %v216 = vld [vmem:[#allocation8] sm:$0xff]
    %v217 = vld [vmem:[#allocation8 + $0x8] sm:$0xff]
    %v218 = vld [vmem:[#allocation8 + $0x10] sm:$0xff]
    %v219 = vld [vmem:[#allocation8 + $0x18] sm:$0xff]
    %v220 = vld [vmem:[#allocation8 + $0x20] sm:$0xff]
    %v221 = vld [vmem:[#allocation8 + $0x28] sm:$0xff]
    %v222 = vld [vmem:[#allocation8 + $0x30] sm:$0xff]
    %v223 = vld [vmem:[#allocation8 + $0x38] sm:$0xff]
    %225 = vset.pattern.permute.xlu0 0
    %226 = vperm.xlu0 %225, %v215
    %v227 = vpop.permute.xlu0 %226
    %v229 = vmul.f32 %v227, %v216
    %v230 = vmul.f32 %v227, %v217
    %v231 = vmul.f32 %v227, %v218
    %v232 = vmul.f32 %v227, %v219
    %v233 = vmul.f32 %v227, %v220
    %v234 = vmul.f32 %v227, %v221
    %v235 = vmul.f32 %v227, %v222
    %v236 = vmul.f32 %v227, %v223
    %v237 = vadd.f32 %v207, %v229
    %v238 = vadd.f32 %v208, %v230
    %v239 = vadd.f32 %v209, %v231
    %v240 = vadd.f32 %v210, %v232
    %v241 = vadd.f32 %v211, %v233
    %v242 = vadd.f32 %v212, %v234
    %v243 = vadd.f32 %v213, %v235
    %v244 = vadd.f32 %v214, %v236
    %s245 = sld [smem:[#allocation11]]
    %v246 = vstv %s245
    %v247 = vmul.f32 %v237, %v246
    %v248 = vmul.f32 %v238, %v246
    %s249 = sld [smem:[#allocation11 + $0x80]]
    %v250 = vstv %s249
    %v251 = vmul.f32 %v239, %v250
    %v252 = vmul.f32 %v240, %v250
    %v253 = vadd.f32 %v247, %v251
    %v254 = vadd.f32 %v248, %v252
    %s255 = sld [smem:[#allocation11 + $0x100]]
    %v256 = vstv %s255
    %v257 = vmul.f32 %v241, %v256
    %v258 = vmul.f32 %v242, %v256
    %v259 = vadd.f32 %v253, %v257
    %v260 = vadd.f32 %v254, %v258
    %s261 = sld [smem:[#allocation11 + $0x180]]
    %v262 = vstv %s261
    %v263 = vmul.f32 %v243, %v262
    %v264 = vmul.f32 %v244, %v262
    %v265 = vadd.f32 %v259, %v263
    %v266 = vadd.f32 %v260, %v264
    %s267 = sld [smem:[#allocation12]]
    %v268 = vstv %s267
    %v269 = vadd.f32 %v265, %v268
    %v270 = vadd.f32 %v266, %v268
    %v271 = vxor.u32 %v269, 2147483648
    %v272 = vxor.u32 %v270, 2147483648
    %v273 = vmul.f32 %v271, 1.442695
    %v274 = vpow.pop %v273
    %v275 = vmul.f32 %v272, 1.442695
    %v276 = vpow.pop %v275
    %v277 = vadd.f32 %v274, 1.0
    %v278 = vadd.f32 %v276, 1.0
    %v279 = vrcp.pop %v277
    %v280 = vmul.f32 1.0, %v279
    %v281 = vrcp.pop %v278
    %v282 = vmul.f32 1.0, %v281
    %283 = vst [vmem:[#allocation17] sm:$0xff] %v280
    %284 = vst [vmem:[#allocation17 + $0x8] sm:$0xff] %v282
    %s285 = sld [smem:[#allocation11 + $0x1]]
    %v286 = vstv %s285
    %v287 = vmul.f32 %v237, %v286
    %v288 = vmul.f32 %v238, %v286
    %s289 = sld [smem:[#allocation11 + $0x81]]
    %v290 = vstv %s289
    %v291 = vmul.f32 %v239, %v290
    %v292 = vmul.f32 %v240, %v290
    %v293 = vadd.f32 %v287, %v291
    %v294 = vadd.f32 %v288, %v292
    %s295 = sld [smem:[#allocation11 + $0x101]]
    %v296 = vstv %s295
    %v297 = vmul.f32 %v241, %v296
    %v298 = vmul.f32 %v242, %v296
    %v299 = vadd.f32 %v293, %v297
    %v300 = vadd.f32 %v294, %v298
    %s301 = sld [smem:[#allocation11 + $0x181]]
    %v302 = vstv %s301
    %v303 = vmul.f32 %v243, %v302
    %v304 = vmul.f32 %v244, %v302
    %v305 = vadd.f32 %v299, %v303
    %v306 = vadd.f32 %v300, %v304
    %s307 = sld [smem:[#allocation12 + $0x1]]
    %v308 = vstv %s307
    %v309 = vadd.f32 %v305, %v308
    %v310 = vadd.f32 %v306, %v308
    %v311 = vxor.u32 %v309, 2147483648
    %v312 = vxor.u32 %v310, 2147483648
    %v313 = vmul.f32 %v311, 1.442695
    %v314 = vpow.pop %v313
    %v315 = vmul.f32 %v312, 1.442695
    %v316 = vpow.pop %v315
    %v317 = vadd.f32 %v314, 1.0
    %v318 = vadd.f32 %v316, 1.0
    %v319 = vrcp.pop %v317
    %v320 = vmul.f32 1.0, %v319
    %v321 = vrcp.pop %v318
    %v322 = vmul.f32 1.0, %v321
    %323 = vst [vmem:[#allocation17 + $0x10] sm:$0xff] %v320
    %324 = vst [vmem:[#allocation17 + $0x18] sm:$0xff] %v322
    %s325 = sld [smem:[#allocation11 + $0x2]]
    %v326 = vstv %s325
    %v327 = vmul.f32 %v237, %v326
    %v328 = vmul.f32 %v238, %v326
    %s329 = sld [smem:[#allocation11 + $0x82]]
    %v330 = vstv %s329
    %v331 = vmul.f32 %v239, %v330
    %v332 = vmul.f32 %v240, %v330
    %v333 = vadd.f32 %v327, %v331
    %v334 = vadd.f32 %v328, %v332
    %s335 = sld [smem:[#allocation11 + $0x102]]
    %v336 = vstv %s335
    %v337 = vmul.f32 %v241, %v336
    %v338 = vmul.f32 %v242, %v336
    %v339 = vadd.f32 %v333, %v337
    %v340 = vadd.f32 %v334, %v338
    %s341 = sld [smem:[#allocation11 + $0x182]]
    %v342 = vstv %s341
    %v343 = vmul.f32 %v243, %v342
    %v344 = vmul.f32 %v244, %v342
    %v345 = vadd.f32 %v339, %v343
    %v346 = vadd.f32 %v340, %v344
    %s347 = sld [smem:[#allocation12 + $0x2]]
    %v348 = vstv %s347
    %v349 = vadd.f32 %v345, %v348
    %v350 = vadd.f32 %v346, %v348
    %v351 = vxor.u32 %v349, 2147483648
    %v352 = vxor.u32 %v350, 2147483648
    %v353 = vmul.f32 %v351, 1.442695
    %v354 = vpow.pop %v353
    %v355 = vmul.f32 %v352, 1.442695
    %v356 = vpow.pop %v355
    %v357 = vadd.f32 %v354, 1.0
    %v358 = vadd.f32 %v356, 1.0
    %v359 = vrcp.pop %v357
    %v360 = vmul.f32 1.0, %v359
    %v361 = vrcp.pop %v358
    %v362 = vmul.f32 1.0, %v361
    %363 = vst [vmem:[#allocation17 + $0x20] sm:$0xff] %v360
    %364 = vst [vmem:[#allocation17 + $0x28] sm:$0xff] %v362
    %s365 = sld [smem:[#allocation11 + $0x3]]
    %v366 = vstv %s365
    %v367 = vmul.f32 %v237, %v366
    %v368 = vmul.f32 %v238, %v366
    %s369 = sld [smem:[#allocation11 + $0x83]]
    %v370 = vstv %s369
    %v371 = vmul.f32 %v239, %v370
    %v372 = vmul.f32 %v240, %v370
    %v373 = vadd.f32 %v367, %v371
    %v374 = vadd.f32 %v368, %v372
    %s375 = sld [smem:[#allocation11 + $0x103]]
    %v376 = vstv %s375
    %v377 = vmul.f32 %v241, %v376
    %v378 = vmul.f32 %v242, %v376
    %v379 = vadd.f32 %v373, %v377
    %v380 = vadd.f32 %v374, %v378
    %s381 = sld [smem:[#allocation11 + $0x183]]
    %v382 = vstv %s381
    %v383 = vmul.f32 %v243, %v382
    %v384 = vmul.f32 %v244, %v382
    %v385 = vadd.f32 %v379, %v383
    %v386 = vadd.f32 %v380, %v384
    %s387 = sld [smem:[#allocation12 + $0x3]]
    %v388 = vstv %s387
    %v389 = vadd.f32 %v385, %v388
    %v390 = vadd.f32 %v386, %v388
    %v391 = vxor.u32 %v389, 2147483648
    %v392 = vxor.u32 %v390, 2147483648
    %v393 = vmul.f32 %v391, 1.442695
    %v394 = vpow.pop %v393
    %v395 = vmul.f32 %v392, 1.442695
    %v396 = vpow.pop %v395
    %v397 = vadd.f32 %v394, 1.0
    %v398 = vadd.f32 %v396, 1.0
    %v399 = vrcp.pop %v397
    %v400 = vmul.f32 1.0, %v399
    %v401 = vrcp.pop %v398
    %v402 = vmul.f32 1.0, %v401
    %403 = vst [vmem:[#allocation17 + $0x30] sm:$0xff] %v400
    %404 = vst [vmem:[#allocation17 + $0x38] sm:$0xff] %v402
    %v405 = vld [vmem:[%s3] sm:$0xff]
    %v406 = vld [vmem:[#allocation9] sm:$0xff]
    %v407 = vld [vmem:[#allocation9 + $0x8] sm:$0xff]
    %v408 = vld [vmem:[#allocation9 + $0x10] sm:$0xff]
    %v409 = vld [vmem:[#allocation9 + $0x18] sm:$0xff]
    %v410 = vld [vmem:[#allocation9 + $0x20] sm:$0xff]
    %v411 = vld [vmem:[#allocation9 + $0x28] sm:$0xff]
    %v412 = vld [vmem:[#allocation9 + $0x30] sm:$0xff]
    %v413 = vld [vmem:[#allocation9 + $0x38] sm:$0xff]
    %415 = vset.pattern.permute.xlu0 0
    %416 = vperm.xlu0 %415, %v405
    %v417 = vpop.permute.xlu0 %416
    %v419 = vmul.f32 %v417, %v406
    %v420 = vmul.f32 %v417, %v407
    %v421 = vmul.f32 %v417, %v408
    %v422 = vmul.f32 %v417, %v409
    %v423 = vmul.f32 %v417, %v410
    %v424 = vmul.f32 %v417, %v411
    %v425 = vmul.f32 %v417, %v412
    %v426 = vmul.f32 %v417, %v413
    %v427 = vadd.f32 %v207, %v419
    %v428 = vadd.f32 %v208, %v420
    %v429 = vadd.f32 %v209, %v421
    %v430 = vadd.f32 %v210, %v422
    %v431 = vadd.f32 %v211, %v423
    %v432 = vadd.f32 %v212, %v424
    %v433 = vadd.f32 %v213, %v425
    %v434 = vadd.f32 %v214, %v426
    %s435 = sld [smem:[#allocation14]]
    %v436 = vstv %s435
    %v437 = vmul.f32 %v427, %v436
    %v438 = vmul.f32 %v428, %v436
    %s439 = sld [smem:[#allocation14 + $0x80]]
    %v440 = vstv %s439
    %v441 = vmul.f32 %v429, %v440
    %v442 = vmul.f32 %v430, %v440
    %v443 = vadd.f32 %v437, %v441
    %v444 = vadd.f32 %v438, %v442
    %s445 = sld [smem:[#allocation14 + $0x100]]
    %v446 = vstv %s445
    %v447 = vmul.f32 %v431, %v446
    %v448 = vmul.f32 %v432, %v446
    %v449 = vadd.f32 %v443, %v447
    %v450 = vadd.f32 %v444, %v448
    %s451 = sld [smem:[#allocation14 + $0x180]]
    %v452 = vstv %s451
    %v453 = vmul.f32 %v433, %v452
    %v454 = vmul.f32 %v434, %v452
    %v455 = vadd.f32 %v449, %v453
    %v456 = vadd.f32 %v450, %v454
    %s457 = sld [smem:[#allocation15]]
    %v458 = vstv %s457
    %v459 = vadd.f32 %v455, %v458
    %v460 = vadd.f32 %v456, %v458
    %v461 = vxor.u32 %v459, 2147483648
    %v462 = vxor.u32 %v460, 2147483648
    %v463 = vmul.f32 %v461, 1.442695
    %v464 = vpow.pop %v463
    %v465 = vmul.f32 %v462, 1.442695
    %v466 = vpow.pop %v465
    %v467 = vadd.f32 %v464, 1.0
    %v468 = vadd.f32 %v466, 1.0
    %v469 = vrcp.pop %v467
    %v470 = vmul.f32 1.0, %v469
    %v471 = vrcp.pop %v468
    %v472 = vmul.f32 1.0, %v471
    %473 = vst [vmem:[#allocation18] sm:$0xff] %v470
    %474 = vst [vmem:[#allocation18 + $0x8] sm:$0xff] %v472
    %s475 = sld [smem:[#allocation14 + $0x1]]
    %v476 = vstv %s475
    %v477 = vmul.f32 %v427, %v476
    %v478 = vmul.f32 %v428, %v476
    %s479 = sld [smem:[#allocation14 + $0x81]]
    %v480 = vstv %s479
    %v481 = vmul.f32 %v429, %v480
    %v482 = vmul.f32 %v430, %v480
    %v483 = vadd.f32 %v477, %v481
    %v484 = vadd.f32 %v478, %v482
    %s485 = sld [smem:[#allocation14 + $0x101]]
    %v486 = vstv %s485
    %v487 = vmul.f32 %v431, %v486
    %v488 = vmul.f32 %v432, %v486
    %v489 = vadd.f32 %v483, %v487
    %v490 = vadd.f32 %v484, %v488
    %s491 = sld [smem:[#allocation14 + $0x181]]
    %v492 = vstv %s491
    %v493 = vmul.f32 %v433, %v492
    %v494 = vmul.f32 %v434, %v492
    %v495 = vadd.f32 %v489, %v493
    %v496 = vadd.f32 %v490, %v494
    %s497 = sld [smem:[#allocation15 + $0x1]]
    %v498 = vstv %s497
    %v499 = vadd.f32 %v495, %v498
    %v500 = vadd.f32 %v496, %v498
    %v501 = vxor.u32 %v499, 2147483648
    %v502 = vxor.u32 %v500, 2147483648
    %v503 = vmul.f32 %v501, 1.442695
    %v504 = vpow.pop %v503
    %v505 = vmul.f32 %v502, 1.442695
    %v506 = vpow.pop %v505
    %v507 = vadd.f32 %v504, 1.0
    %v508 = vadd.f32 %v506, 1.0
    %v509 = vrcp.pop %v507
    %v510 = vmul.f32 1.0, %v509
    %v511 = vrcp.pop %v508
    %v512 = vmul.f32 1.0, %v511
    %513 = vst [vmem:[#allocation18 + $0x10] sm:$0xff] %v510
    %514 = vst [vmem:[#allocation18 + $0x18] sm:$0xff] %v512
    %s515 = sld [smem:[#allocation14 + $0x2]]
    %v516 = vstv %s515
    %v517 = vmul.f32 %v427, %v516
    %v518 = vmul.f32 %v428, %v516
    %s519 = sld [smem:[#allocation14 + $0x82]]
    %v520 = vstv %s519
    %v521 = vmul.f32 %v429, %v520
    %v522 = vmul.f32 %v430, %v520
    %v523 = vadd.f32 %v517, %v521
    %v524 = vadd.f32 %v518, %v522
    %s525 = sld [smem:[#allocation14 + $0x102]]
    %v526 = vstv %s525
    %v527 = vmul.f32 %v431, %v526
    %v528 = vmul.f32 %v432, %v526
    %v529 = vadd.f32 %v523, %v527
    %v530 = vadd.f32 %v524, %v528
    %s531 = sld [smem:[#allocation14 + $0x182]]
    %v532 = vstv %s531
    %v533 = vmul.f32 %v433, %v532
    %v534 = vmul.f32 %v434, %v532
    %v535 = vadd.f32 %v529, %v533
    %v536 = vadd.f32 %v530, %v534
    %s537 = sld [smem:[#allocation15 + $0x2]]
    %v538 = vstv %s537
    %v539 = vadd.f32 %v535, %v538
    %v540 = vadd.f32 %v536, %v538
    %v541 = vxor.u32 %v539, 2147483648
    %v542 = vxor.u32 %v540, 2147483648
    %v543 = vmul.f32 %v541, 1.442695
    %v544 = vpow.pop %v543
    %v545 = vmul.f32 %v542, 1.442695
    %v546 = vpow.pop %v545
    %v547 = vadd.f32 %v544, 1.0
    %v548 = vadd.f32 %v546, 1.0
    %v549 = vrcp.pop %v547
    %v550 = vmul.f32 1.0, %v549
    %v551 = vrcp.pop %v548
    %v552 = vmul.f32 1.0, %v551
    %553 = vst [vmem:[#allocation18 + $0x20] sm:$0xff] %v550
    %554 = vst [vmem:[#allocation18 + $0x28] sm:$0xff] %v552
    %s555 = sld [smem:[#allocation14 + $0x3]]
    %v556 = vstv %s555
    %v557 = vmul.f32 %v427, %v556
    %v558 = vmul.f32 %v428, %v556
    %s559 = sld [smem:[#allocation14 + $0x83]]
    %v560 = vstv %s559
    %v561 = vmul.f32 %v429, %v560
    %v562 = vmul.f32 %v430, %v560
    %v563 = vadd.f32 %v557, %v561
    %v564 = vadd.f32 %v558, %v562
    %s565 = sld [smem:[#allocation14 + $0x103]]
    %v566 = vstv %s565
    %v567 = vmul.f32 %v431, %v566
    %v568 = vmul.f32 %v432, %v566
    %v569 = vadd.f32 %v563, %v567
    %v570 = vadd.f32 %v564, %v568
    %s571 = sld [smem:[#allocation14 + $0x183]]
    %v572 = vstv %s571
    %v573 = vmul.f32 %v433, %v572
    %v574 = vmul.f32 %v434, %v572
    %v575 = vadd.f32 %v569, %v573
    %v576 = vadd.f32 %v570, %v574
    %s577 = sld [smem:[#allocation15 + $0x3]]
    %v578 = vstv %s577
    %v579 = vadd.f32 %v575, %v578
    %v580 = vadd.f32 %v576, %v578
    %v581 = vxor.u32 %v579, 2147483648
    %v582 = vxor.u32 %v580, 2147483648
    %v583 = vmul.f32 %v581, 1.442695
    %v584 = vpow.pop %v583
    %v585 = vmul.f32 %v582, 1.442695
    %v586 = vpow.pop %v585
    %v587 = vadd.f32 %v584, 1.0
    %v588 = vadd.f32 %v586, 1.0
    %v589 = vrcp.pop %v587
    %v590 = vmul.f32 1.0, %v589
    %v591 = vrcp.pop %v588
    %v592 = vmul.f32 1.0, %v591
    %593 = vst [vmem:[#allocation18 + $0x30] sm:$0xff] %v590
    %594 = vst [vmem:[#allocation18 + $0x38] sm:$0xff] %v592
    // Predicated region
    $region74: #{tpu_custom_call.1} parent=1 // pred_check
      _
    $region75: #{tpu_custom_call.1} parent=1 // pred_check_branch
      %596 = sbr.rel (0) target = $region77
    $region76: #{tpu_custom_call.1} parent=1 // pred_region
      %s598 = ssub.s32 1024, 1024
      %599 = vsyncadd [#allocation4], %s598
      %s601 = sshll.u32 [#allocation17], 4
      %s602 = int_to_ptr.vmem [resolvable:$true] %s601
      %604 = dma.vmem_to_hbm [thread:$0]  %s602, 1024, %s10, [#allocation4]
    $region77: #{tpu_custom_call.1} parent=1 // pred_fallthru
      _
    // Predicated region
    $region78: #{tpu_custom_call.1} parent=1 // pred_check
      _
    $region79: #{tpu_custom_call.1} parent=1 // pred_check_branch
      %606 = sbr.rel (0) target = $region81
    $region80: #{tpu_custom_call.1} parent=1 // pred_region
      %s608 = ssub.s32 1024, 1024
      %609 = vsyncadd [#allocation19], %s608
      %s611 = sshll.u32 [#allocation18], 4
      %s612 = int_to_ptr.vmem [resolvable:$true] %s611
      %614 = dma.vmem_to_hbm [thread:$0]  %s612, 1024, %s11, [#allocation19]
    $region81: #{tpu_custom_call.1} parent=1 // pred_fallthru
      _
    // Predicated region
    $region82: #{tpu_custom_call.1} parent=1 // pred_check
      _
    $region83: #{tpu_custom_call.1} parent=1 // pred_check_branch
      %616 = sbr.rel (0) target = $region85
    $region84: #{tpu_custom_call.1} parent=1 // pred_region
      %617 = dma.done [#allocation4], 1024
    $region85: #{tpu_custom_call.1} parent=1 // pred_fallthru
      _
    // Predicated region
    $region86: #{tpu_custom_call.1} parent=1 // pred_check
      _
    $region87: #{tpu_custom_call.1} parent=1 // pred_check_branch
      %619 = sbr.rel (0) target = $region89
    $region88: #{tpu_custom_call.1} parent=1 // pred_region
      %620 = dma.done [#allocation19], 1024
    $region89: #{tpu_custom_call.1} parent=1 // pred_fallthru
      _
    %621 = vsyncpa [#allocation3], 1
    %622 = vsyncpa [#allocation7], 1
    %623 = vsyncpa [#allocation10], 1
    %624 = vsyncpa [#allocation4], 1
    %625 = vsyncpa [#allocation19], 1
    %626 = vsyncpa [#allocation5], 1
    %627 = vsyncpa [#allocation13], 1
    %628 = vsyncpa [#allocation16], 1

</llo_original>
